<compile_context>
chip_gen: v7x
topology: tpu7x:2x2x1
jax: 0.10.0
libtpu: 0.0.40
codegen_flags: <defaults>
</compile_context>

<pallas_src>
import functools

import numpy as np
import jax
import jax.numpy as jnp
from jax import lax
from jax.experimental import pallas as pl
from jax.experimental.pallas import tpu as pltpu

NUM_CLASSES = 10
BATCH_BLOCK = 8          # images per grid step; must be a multiple of 8


# -----------------------------------------------------------------------------
# pltpu.roll direction self-check (resolved once, eagerly, outside any jit).
# The kernel needs "shift up": out[i] = x[i + s].  With numpy-style roll
# semantics that is roll(x, R - s); with the opposite convention it is
# roll(x, s).  The probe makes the packed kernel robust to either.
# -----------------------------------------------------------------------------
_ROLL_IS_NUMPY_STYLE = True


def _probe_roll_direction():
    global _ROLL_IS_NUMPY_STYLE

    def k(x_ref, o_ref):
        o_ref[...] = pltpu.roll(x_ref[...], 1, axis=0)

    x = jnp.arange(8 * 128, dtype=jnp.float32).reshape(8, 128)
    y = pl.pallas_call(
        k, out_shape=jax.ShapeDtypeStruct((8, 128), jnp.float32))(x)
    _ROLL_IS_NUMPY_STYLE = bool(jnp.array_equal(y, jnp.roll(x, 1, axis=0)))


# -----------------------------------------------------------------------------
# Parameters (PyTorch layouts; kaiming_uniform with relu gain, zero biases)
# -----------------------------------------------------------------------------
def init_params(key, num_classes=NUM_CLASSES):
    ks = jax.random.split(key, 5)

    def ku(k, shape, fan_in):
        bound = float(np.sqrt(6.0 / fan_in))
        return jax.random.uniform(k, shape, jnp.float32, -bound, bound)

    return {
        "conv1_w": ku(ks[0], (6, 3, 5, 5), 3 * 25),
        "conv1_b": jnp.zeros((6,), jnp.float32),
        "conv2_w": ku(ks[1], (16, 6, 5, 5), 6 * 25),
        "conv2_b": jnp.zeros((16,), jnp.float32),
        "fc1_w": ku(ks[2], (120, 400), 400),
        "fc1_b": jnp.zeros((120,), jnp.float32),
        "fc2_w": ku(ks[3], (84, 120), 120),
        "fc2_b": jnp.zeros((84,), jnp.float32),
        "fc3_w": ku(ks[4], (num_classes, 84), 84),
        "fc3_b": jnp.zeros((num_classes,), jnp.float32),
    }


# -----------------------------------------------------------------------------
# One-time host-side weight packing into lane-dense "banded" matmul operands.
# Matmul operands are stored in bf16 (native MXU input dtype), biases in f32.
# -----------------------------------------------------------------------------
def pack_params(p, num_classes=NUM_CLASSES, batch_block=BATCH_BLOCK):
    _probe_roll_direction()   # eager, one-time; sets the roll-direction flag

    conv1_w = np.asarray(p["conv1_w"], np.float32)
    conv1_b = np.asarray(p["conv1_b"], np.float32)
    conv2_w = np.asarray(p["conv2_w"], np.float32)
    conv2_b = np.asarray(p["conv2_b"], np.float32)
    fc1_w = np.asarray(p["fc1_w"], np.float32)
    fc1_b = np.asarray(p["fc1_b"], np.float32)
    fc2_w = np.asarray(p["fc2_w"], np.float32)
    fc2_b = np.asarray(p["fc2_b"], np.float32)
    fc3_w = np.asarray(p["fc3_w"], np.float32)
    fc3_b = np.asarray(p["fc3_b"], np.float32)

    # conv1: out[oi, oj*8+co] = sum_kh (x rows shifted by kh) @ a1[kh]
    a1 = np.zeros((5, 128, 256), np.float32)
    for kh in range(5):
        for oj in range(28):
            for kw in range(5):
                w = oj + kw
                for c in range(3):
                    for co in range(6):
                        a1[kh, w * 4 + c, oj * 8 + co] = conv1_w[co, c, kh, kw]
    b1 = np.zeros((1, 256), np.float32)
    for oj in range(28):
        b1[0, oj * 8:oj * 8 + 6] = conv1_b

    # conv2 on the pooled1 layout: out[2*oi2, 16*oj2+co2]
    a2 = np.zeros((5, 256, 256), np.float32)
    for kh in range(5):
        for oj2 in range(10):
            for kw in range(5):
                pj = oj2 + kw
                for c in range(6):
                    for co2 in range(16):
                        a2[kh, 16 * pj + c, oj2 * 16 + co2] = conv2_w[co2, c, kh, kw]
    b2 = np.zeros((1, 256), np.float32)
    for oj2 in range(10):
        b2[0, oj2 * 16:oj2 * 16 + 16] = conv2_b

    # fc1 row-gather selectors: g1[ph, b, 32*b + 4*ph] = 1 picks pooled2 row ph
    # of image b out of the (32*B, 256) slab.
    g1 = np.zeros((5, batch_block, 32 * batch_block), np.float32)
    for ph in range(5):
        for b in range(batch_block):
            g1[ph, b, 32 * b + 4 * ph] = 1.0

    # fc1 with the (C,H,W) flatten and the pooled-lane selection folded in.
    f1 = np.zeros((5, 256, 128), np.float32)
    for ph in range(5):
        for pj2 in range(5):
            for co2 in range(16):
                f1[ph, 32 * pj2 + co2, :120] = fc1_w[:, co2 * 25 + ph * 5 + pj2]
    fb1 = np.zeros((1, 128), np.float32)
    fb1[0, :120] = fc1_b

    w2 = np.zeros((128, 128), np.float32)
    w2[:120, :84] = fc2_w.T
    fb2 = np.zeros((1, 128), np.float32)
    fb2[0, :84] = fc2_b

    w3 = np.zeros((128, 128), np.float32)
    w3[:84, :num_classes] = fc3_w.T
    fb3 = np.zeros((1, 128), np.float32)
    fb3[0, :num_classes] = fc3_b

    as_bf16 = dict(a1=a1, a2=a2, g1=g1, f1=f1, w2=w2, w3=w3)
    as_f32 = dict(b1=b1, b2=b2, fb1=fb1, fb2=fb2, fb3=fb3)
    packed = {k: jnp.asarray(v, jnp.bfloat16) for k, v in as_bf16.items()}
    packed.update({k: jnp.asarray(v, jnp.float32) for k, v in as_f32.items()})
    return packed


# -----------------------------------------------------------------------------
# Fused kernel: whole LeNet-5 forward for B images per grid step.
# -----------------------------------------------------------------------------
def _lenet5_kernel(x_ref, a1_ref, b1_ref, a2_ref, b2_ref, g1_ref, f1_ref,
                   fb1_ref, w2_ref, fb2_ref, w3_ref, fb3_ref, o_ref):
    f32, bf16 = jnp.float32, jnp.bfloat16

    def shift_up_rows(m, s):
        # out[i, :] = m[i + s, :].  Wrapped-in rows only land in rows that no
        # later stage reads (rows >= 28 of each image for conv1, >= 24 for
        # conv2, garbage rows of the pooled layouts).
        amt = (m.shape[0] - s) if _ROLL_IS_NUMPY_STYLE else s
        return pltpu.roll(m, amt, axis=0)

    def shift_up_lanes(m, s):
        # out[:, l] = m[:, l + s]; wrap lands in unread padding lanes.
        amt = (m.shape[1] - s) if _ROLL_IS_NUMPY_STYLE else s
        return pltpu.roll(m, amt, axis=1)

    def mxu(a, b):
        # bf16 x bf16 single-pass MXU matmul with f32 accumulation.
        return jnp.dot(a.astype(bf16), b, preferred_element_type=f32)

    x = x_ref[...]                                              # (32B, 128) f32

    # conv1 (3->6, k=5) + bias + ReLU
    acc = mxu(x, a1_ref[0])
    for kh in range(1, 5):
        acc = acc + mxu(shift_up_rows(x, kh), a1_ref[kh])
    y = jnp.maximum(acc + b1_ref[...], 0.0)                     # (32B, 256)

    # maxpool 2x2 stride 2 (row phase, then width phase)
    y = jnp.maximum(y, shift_up_rows(y, 1))
    y = jnp.maximum(y, shift_up_lanes(y, 8))

    # conv2 (6->16, k=5) + bias + ReLU (reads pooled rows 2*i / lanes 16*j)
    acc = mxu(y, a2_ref[0])
    for kh in range(1, 5):
        acc = acc + mxu(shift_up_rows(y, 2 * kh), a2_ref[kh])
    z = jnp.maximum(acc + b2_ref[...], 0.0)                     # (32B, 256)

    # maxpool 2x2 stride 2
    z = jnp.maximum(z, shift_up_rows(z, 2))
    z = jnp.maximum(z, shift_up_lanes(z, 16))

    # fc1: gather the 5 live pooled2 rows of each image with a 0/1 selection
    # matmul (M = B), then apply the banded fc1 weights -> (B, 128) tile.
    zb = z.astype(bf16)
    h = None
    for ph in range(5):
        rows = jnp.dot(g1_ref[ph], zb, preferred_element_type=f32)   # (B, 256)
        part = mxu(rows, f1_ref[ph])                                 # (B, 128)
        h = part if h is None else h + part
    h = jnp.maximum(h + fb1_ref[...], 0.0)
    # TODO(synk): nn.Dropout(0.5) layers are eval-mode identity (inference).

    # fc2 + ReLU, then fc3 logits (padded to 128 lanes; sliced in the wrapper)
    h = jnp.maximum(mxu(h, w2_ref[...]) + fb2_ref[...], 0.0)
    o_ref[...] = mxu(h, w3_ref[...]) + fb3_ref[...]             # (B, 128)


# -----------------------------------------------------------------------------
# Wrapper: lane-dense input packing and ONE fused pallas_call over the batch.
# -----------------------------------------------------------------------------
_PACK_ORDER = ("a1", "b1", "a2", "b2", "g1", "f1", "fb1",
               "w2", "fb2", "w3", "fb3")


def lenet5_forward(x, packed):
    batch_block = packed["g1"].shape[1]          # images per grid step
    assert batch_block % 8 == 0
    n = x.shape[0]
    nb = pl.cdiv(n, batch_block)
    n_pad = nb * batch_block

    # NCHW -> rows = H, lanes = W*4 + c (channel padded 3->4), then collapse
    # (N, 32) into a single lane-dense row axis: (N*32, 128).
    # TODO(synk): accept the pre-packed layout upstream to drop this XLA op.
    xr = jnp.pad(jnp.transpose(x, (0, 2, 3, 1)),
                 ((0, n_pad - n), (0, 0), (0, 0), (0, 1)))
    xr = xr.reshape(n_pad * 32, 128).astype(jnp.float32)

    def const_spec(a):
        return pl.BlockSpec(a.shape, lambda i, nd=a.ndim: (0,) * nd)

    out = pl.pallas_call(
        _lenet5_kernel,
        out_shape=jax.ShapeDtypeStruct((n_pad, 128), jnp.float32),
        grid=(nb,),
        in_specs=[pl.BlockSpec((batch_block * 32, 128), lambda i: (i, 0))]
                 + [const_spec(packed[k]) for k in _PACK_ORDER],
        out_specs=pl.BlockSpec((batch_block, 128), lambda i: (i, 0)),
        compiler_params=pltpu.CompilerParams(
            dimension_semantics=("parallel",)),
    )(xr, *[packed[k] for k in _PACK_ORDER])
    return out[:n, :NUM_CLASSES]


# -----------------------------------------------------------------------------
# Pure-JAX reference (f32, HIGHEST precision -> gold standard for the check)
# -----------------------------------------------------------------------------
@jax.jit
def lenet5_reference(x, p):
    hp = lax.Precision.HIGHEST
    dn = ("NCHW", "OIHW", "NCHW")
    y = lax.conv_general_dilated(x, p["conv1_w"], (1, 1), "VALID",
                                 dimension_numbers=dn, precision=hp)
    y = jax.nn.relu(y + p["conv1_b"][None, :, None, None])
    y = lax.reduce_window(y, -jnp.inf, lax.max, (1, 1, 2, 2), (1, 1, 2, 2),
                          "VALID")
    y = lax.conv_general_dilated(y, p["conv2_w"], (1, 1), "VALID",
                                 dimension_numbers=dn, precision=hp)
    y = jax.nn.relu(y + p["conv2_b"][None, :, None, None])
    y = lax.reduce_window(y, -jnp.inf, lax.max, (1, 1, 2, 2), (1, 1, 2, 2),
                          "VALID")
    y = y.reshape(y.shape[0], -1)
    y = jax.nn.relu(jnp.dot(y, p["fc1_w"].T, precision=hp) + p["fc1_b"])
    y = jax.nn.relu(jnp.dot(y, p["fc2_w"].T, precision=hp) + p["fc2_b"])
    return jnp.dot(y, p["fc3_w"].T, precision=hp) + p["fc3_b"]


if __name__ == "__main__":
    key = jax.random.PRNGKey(0)
    k_x, k_p = jax.random.split(key)
    # LeNet-5 geometry requires 3x32x32 inputs (16*5*5 flatten).  Batch 12 is
    # small but exercises the batched grid (padded to 16 -> grid of 2 steps).
    x = jax.random.normal(k_x, (12, 3, 32, 32), dtype=jnp.float32)
    params = init_params(k_p, num_classes=NUM_CLASSES)
    packed = pack_params(params, num_classes=NUM_CLASSES)  # one-time host pack

    fwd = jax.jit(functools.partial(lenet5_forward, packed=packed))
    out = jax.block_until_ready(fwd(x))
    assert out.shape == (12, NUM_CLASSES) and out.dtype == jnp.float32

    ref = jax.block_until_ready(lenet5_reference(x, params))
    max_err = float(jnp.max(jnp.abs(out - ref)))
    rel_err = float(jnp.linalg.norm(out - ref) / jnp.linalg.norm(ref))
    # bf16-operand / f32-accumulate tolerance (logits have std ~3.5).
    assert jnp.allclose(out, ref, atol=1e-1, rtol=5e-2), (max_err, rel_err)
    assert rel_err < 2e-2, rel_err

    print("KERNEL_OK")
</pallas_src>

<mosaic_0001>
module attributes {stable_mosaic.version = 11 : i64} {
  func.func @k(%arg0: memref<8x128xf32, #tpu.memory_space<vmem>>, %arg1: memref<8x128xf32, #tpu.memory_space<vmem>>) attributes {dimension_semantics = [], scalar_prefetch = 0 : i64, scratch_operands = 0 : i64, tpu.core_type = #tpu.core_type<tc>} {
    %c0 = arith.constant 0 : index
    %c0_0 = arith.constant 0 : index
    %0 = vector.load %arg0[%c0, %c0_0] : memref<8x128xf32, #tpu.memory_space<vmem>>, vector<8x128xf32>
    %c1_i32 = arith.constant 1 : i32
    %1 = tpu.dynamic_rotate %0 by %c1_i32 dim 0 : vector<8x128xf32>, i32 -> vector<8x128xf32>
    %c0_1 = arith.constant 0 : index
    %c0_2 = arith.constant 0 : index
    %2 = vector.load %arg1[%c0_1, %c0_2] : memref<8x128xf32, #tpu.memory_space<vmem>>, vector<8x128xf32>
    tpu.vector_store %arg1[%c0_1, %c0_2], %1 {strides = array<i32>} : memref<8x128xf32, #tpu.memory_space<vmem>>, vector<8x128xf32>,
    return
  }
}

</mosaic_0001>

<llo_original>
// kernel: tpu_custom_call.1
$region0: #{tpu_custom_call.1}
  #allocation0 [shape = 'u32[]', space=smem, size = 0x4, offset = 0x4, fixed_abs, tag = 'smem constant byte address 0x4 - core index']
  #allocation1 [shape = 'u32[144,128]{1,0:T(1,128)}', space=vmem, size = 0x12000, scoped, tag = 'internal scratch']
  %s0 = inlined_call_operand.hbm [shape: f32[8,128], index: 0, kind: input, shape index: {}]
  %s1 = inlined_call_operand.hbm [shape: f32[8,128], index: 1, kind: output, shape index: {}]
  %s2 = sld [smem:[#allocation0]]
  $region18: #{tpu_custom_call.1} parent=0
    _
  %s4 = ssub.s32 1, %s2
  %s5 = scalar_select 0, %s4, %s2
  $region1: #{tpu_custom_call.1} parent=0
    #allocation2 [shape = 'u8[4096]{0}', space=vmem, size = 0x1000, scoped, tag = 'input window, operand 0, single buffered']
    #allocation3 [shape = 's32[1]{0}', space=sflag, size = 0x4, scoped, tag = 'scoped memory for tpu_custom_call.1']
    #allocation4 [shape = 's32[1]{0}', space=sflag, size = 0x4, scoped, tag = 'scoped memory for tpu_custom_call.1']
    #allocation5 [shape = 'u8[4096]{0}', space=vmem, size = 0x1000, scoped, tag = 'output window, operand 0, single buffered']
    %6 = vsyncpa [#allocation3], 0
    %7 = vsyncpa [#allocation4], 0
    // Predicated region
    $region2: #{tpu_custom_call.1} parent=1 // pred_check
      _
    $region3: #{tpu_custom_call.1} parent=1 // pred_check_branch
      %9 = sbr.rel (0) target = $region5
    $region4: #{tpu_custom_call.1} parent=1 // pred_region
      %s11 = ssub.s32 128, 128
      %12 = vsyncadd [#allocation3], %s11
      %s14 = sshll.u32 [#allocation2], 4
      %s15 = int_to_ptr.vmem [resolvable:$true] %s14
      %17 = dma.hbm_to_vmem [thread:$0]  %s0, 128, %s15, [#allocation3]
    $region5: #{tpu_custom_call.1} parent=1 // pred_fallthru
      _
    // Predicated region
    $region6: #{tpu_custom_call.1} parent=1 // pred_check
      _
    $region7: #{tpu_custom_call.1} parent=1 // pred_check_branch
      %19 = sbr.rel (0) target = $region9
    $region8: #{tpu_custom_call.1} parent=1 // pred_region
      %20 = dma.done [#allocation3], 128
    $region9: #{tpu_custom_call.1} parent=1 // pred_fallthru
      _
    %v21 = vld [vmem:[#allocation2] sm:$0xff]
    %v22 = vrot.slane %v21, 7
    %23 = vst [vmem:[#allocation5] sm:$0xff] %v22
    // Predicated region
    $region10: #{tpu_custom_call.1} parent=1 // pred_check
      _
    $region11: #{tpu_custom_call.1} parent=1 // pred_check_branch
      %25 = sbr.rel (0) target = $region13
    $region12: #{tpu_custom_call.1} parent=1 // pred_region
      %s27 = ssub.s32 128, 128
      %28 = vsyncadd [#allocation4], %s27
      %s30 = sshll.u32 [#allocation5], 4
      %s31 = int_to_ptr.vmem [resolvable:$true] %s30
      %33 = dma.vmem_to_hbm [thread:$0]  %s31, 128, %s1, [#allocation4]
    $region13: #{tpu_custom_call.1} parent=1 // pred_fallthru
      _
    // Predicated region
    $region14: #{tpu_custom_call.1} parent=1 // pred_check
      _
    $region15: #{tpu_custom_call.1} parent=1 // pred_check_branch
      %35 = sbr.rel (0) target = $region17
    $region16: #{tpu_custom_call.1} parent=1 // pred_region
      %36 = dma.done [#allocation4], 128
    $region17: #{tpu_custom_call.1} parent=1 // pred_fallthru
      _
    %37 = vsyncpa [#allocation3], 1
    %38 = vsyncpa [#allocation4], 1

</llo_original>
